<compile_context>
chip_gen: v5e
topology: v5e:2x2
jax: 0.10.0
libtpu: 0.0.40
codegen_flags: <defaults>
</compile_context>

<pallas_src>
from functools import partial

import jax
import jax.numpy as jnp
from jax.experimental import pallas as pl
from jax.experimental.pallas import tpu as pltpu

BN_EPS = 1e-5
NORM_EPS = 1e-12       # clamp on the product of squared norms (zero-embedding guard)
FEATURE_ALIGN = 256    # MXU-friendly feature padding (2x256x256 MXU on v6e/v7x)
BATCH_ALIGN = 128


def _round_up(x, m):
    return (x + m - 1) // m * m


def cosine_uttex_kernel(x1_ref, x2_ref, w_ref, b_ref, out_ref):
    # Two MXU matmuls against the resident (BN-folded) weight, f32 accumulation.
    y1 = jnp.dot(x1_ref[...], w_ref[...], preferred_element_type=jnp.float32)
    y2 = jnp.dot(x2_ref[...], w_ref[...], preferred_element_type=jnp.float32)
    y1 = y1 + b_ref[...]                                  # folded bias, f32
    y2 = y2 + b_ref[...]

    dot = jnp.sum(y1 * y2, axis=1, keepdims=True)         # (TB, 1)
    n1s = jnp.sum(y1 * y1, axis=1, keepdims=True)         # (TB, 1)
    n2s = jnp.sum(y2 * y2, axis=1, keepdims=True)         # (TB, 1)

    # cosine = dot / (||y1|| * ||y2||) == dot * rsqrt(n1sq * n2sq); rsqrt -> EUP,
    # eps clamp avoids NaN/Inf for all-zero embeddings.
    out_ref[...] = dot * jax.lax.rsqrt(jnp.maximum(n1s * n2s, NORM_EPS))


def prepare_params(params):
    """Fold BatchNorm1d (eval) into the Linear layer and pad to TPU-friendly dims.

    Returns:
      w: (D_in_p, D_out_p) bfloat16 folded weight (already transposed)
      b: (1, D_out_p)      float32  folded bias
    Zero padding keeps the padded feature columns of y exactly zero, so they do
    not perturb the dot products / norms.
    """
    d_out, d_in = params["w"].shape
    scale = params["gamma"] / jnp.sqrt(params["running_var"] + BN_EPS)   # (D_in,)
    shift = params["beta"] - params["running_mean"] * scale              # (D_in,)
    w_folded = scale[:, None] * params["w"].T                            # (D_in, D_out)
    b_folded = shift @ params["w"].T + params["b"]                       # (D_out,)

    d_in_p = _round_up(d_in, FEATURE_ALIGN)
    d_out_p = _round_up(d_out, FEATURE_ALIGN)
    w_p = jnp.zeros((d_in_p, d_out_p), jnp.float32).at[:d_in, :d_out].set(w_folded)
    b_p = jnp.zeros((1, d_out_p), jnp.float32).at[0, :d_out].set(b_folded)
    # bf16 weight halves the resident footprint; f32 MXU accumulation keeps the
    # cosine scores stable to ~1e-3..1e-2 (keep w_p in f32 here if tighter
    # precision is ever needed -- it is resident, so the DMA cost is one-time).
    return {"w": w_p.astype(jnp.bfloat16), "b": b_p}


@partial(jax.jit, static_argnames=("tile_b",))
def cosine_uttex(x1, x2, prep, tile_b=512):
    """x1, x2: (B, D_in) float arrays. Returns (B,) cosine scores.

    tile_b: max batch tile (multiple of 128). 512 is a good v7x default; on
    v5e/v6e (128 MiB VMEM) raising it to 1024-2048 amortizes per-step pipeline
    overhead further. When B > 128 the tile is additionally capped at ceil(B/2)
    rounded to 128 so the grid always has >= 2 tiles for v7x's two TensorCores.
    """
    assert x1.shape == x2.shape
    assert tile_b % BATCH_ALIGN == 0
    b, d_in = x1.shape
    d_in_p, d_out_p = prep["w"].shape

    if b <= BATCH_ALIGN:
        tb = BATCH_ALIGN
    else:
        tb = min(tile_b, _round_up(-(-b // 2), BATCH_ALIGN))
    bp = _round_up(b, tb)
    grid = (bp // tb,)

    def prep_x(x):
        # Cast to bf16 *before* padding (halves wrapper-side HBM writes); skip
        # padding entirely when shapes are already aligned.
        x = x.astype(jnp.bfloat16)
        if bp != b or d_in_p != d_in:
            x = jnp.pad(x, ((0, bp - b), (0, d_in_p - d_in)))
        return x

    x1p = prep_x(x1)
    x2p = prep_x(x2)

    # Realistic VMEM budget: double-buffered x1/x2 tiles + resident W/b (the
    # pipeline still allocates two buffers for the constant-index weight) + f32
    # y1/y2 temporaries, with 2x headroom, clamped to 48 MiB (< v7x's 64 MiB).
    x_tile_bytes = tb * d_in_p * 2                        # one bf16 x tile
    w_bytes = d_in_p * d_out_p * 2 + d_out_p * 4          # folded W (bf16) + bias
    y_bytes = 2 * tb * d_out_p * 4                        # y1/y2 f32 temporaries
    out_bytes = tb * 4
    need = 4 * x_tile_bytes + 2 * w_bytes + 2 * y_bytes + 2 * out_bytes
    vmem_limit = int(min(max(2 * need, 16 * 1024 * 1024), 48 * 1024 * 1024))

    out = pl.pallas_call(
        cosine_uttex_kernel,
        out_shape=jax.ShapeDtypeStruct((bp, 1), jnp.float32),
        grid_spec=pltpu.PrefetchScalarGridSpec(
            num_scalar_prefetch=0,
            grid=grid,
            in_specs=[
                pl.BlockSpec((tb, d_in_p), lambda i: (i, 0)),        # x1 tile
                pl.BlockSpec((tb, d_in_p), lambda i: (i, 0)),        # x2 tile
                # Folded weight/bias are resident: constant block index means the
                # pipeline never re-DMAs them. (pl.Buffered(1) could additionally
                # drop their unused second buffer if VMEM ever gets tight.)
                pl.BlockSpec((d_in_p, d_out_p), lambda i: (0, 0)),   # folded W
                pl.BlockSpec((1, d_out_p), lambda i: (0, 0)),        # folded b
            ],
            out_specs=pl.BlockSpec((tb, 1), lambda i: (i, 0)),       # score column
        ),
        compiler_params=pltpu.CompilerParams(
            dimension_semantics=("parallel",),       # independent batch tiles
            vmem_limit_bytes=vmem_limit,
        ),
    )(x1p, x2p, prep["w"], prep["b"])

    # Padded batch rows (x = 0) give cosine(bias, bias) ~= 1; slicing to :b
    # removes them. Matches xs.squeeze_() in the PyTorch module: (B,) scores.
    return out[:b, 0]


def make_params(key, d_in, d_out):
    k = jax.random.split(key, 6)
    return {
        # bn6 (BatchNorm1d) running stats + affine
        "running_mean": jax.random.normal(k[0], (d_in,), jnp.float32) * 0.1,
        "running_var": jax.random.uniform(k[1], (d_in,), jnp.float32, 0.5, 1.5),
        "gamma": jax.random.normal(k[2], (d_in,), jnp.float32) * 0.1 + 1.0,
        "beta": jax.random.normal(k[3], (d_in,), jnp.float32) * 0.1,
        # tdnn7 (Linear)
        "w": jax.random.normal(k[4], (d_out, d_in), jnp.float32) / jnp.sqrt(d_in),
        "b": jax.random.normal(k[5], (d_out,), jnp.float32) * 0.01,
    }


def reference(x1, x2, p):
    def pre(x):
        h = (x - p["running_mean"]) / jnp.sqrt(p["running_var"] + BN_EPS)
        h = h * p["gamma"] + p["beta"]
        return h @ p["w"].T + p["b"]

    y1, y2 = pre(x1), pre(x2)
    return jnp.sum(y1 * y2, axis=1) / (
        jnp.linalg.norm(y1, axis=1) * jnp.linalg.norm(y2, axis=1))


if __name__ == "__main__":
    B, D_IN, D_OUT = 2, 32, 32
    key = jax.random.PRNGKey(0)
    kx1, kx2, kp = jax.random.split(key, 3)
    x1 = jax.random.normal(kx1, (B, D_IN), jnp.float32)
    x2 = jax.random.normal(kx2, (B, D_IN), jnp.float32)
    params = make_params(kp, D_IN, D_OUT)

    prep = prepare_params(params)
    out = cosine_uttex(x1, x2, prep)
    out = jax.block_until_ready(out)

    ref = reference(x1, x2, params)
    assert out.shape == (B,)
    # Tolerance loosened vs the f32 reference because activations/weights are fed
    # to the MXU in bfloat16 (f32 accumulation); cosine scores are stable to
    # ~1e-3..1e-2.
    assert jnp.allclose(out, ref, atol=2e-2, rtol=2e-2), (out, ref)
    print("KERNEL_OK")
</pallas_src>

<mosaic_0001>
module attributes {stable_mosaic.version = 11 : i64} {
  func.func @cosine_uttex_kernel(%arg0: i32, %arg1: memref<128x256xbf16, #tpu.memory_space<vmem>>, %arg2: memref<128x256xbf16, #tpu.memory_space<vmem>>, %arg3: memref<256x256xbf16, #tpu.memory_space<vmem>>, %arg4: memref<1x256xf32, #tpu.memory_space<vmem>>, %arg5: memref<128x1xf32, #tpu.memory_space<vmem>>) attributes {dimension_semantics = [#tpu.dimension_semantics<parallel>], iteration_bounds = array<i64: 1>, scalar_prefetch = 0 : i64, scratch_operands = 0 : i64, tpu.core_type = #tpu.core_type<tc>, window_params = [{transform_indices = @transform_0, window_bounds = array<i64: 128, 256>}, {transform_indices = @transform_1, window_bounds = array<i64: 128, 256>}, {pipeline_mode = #tpu.pipeline_mode<synchronous>, transform_indices = @transform_2, window_bounds = array<i64: 256, 256>}, {pipeline_mode = #tpu.pipeline_mode<synchronous>, transform_indices = @transform_3, window_bounds = array<i64: 1, 256>}, {transform_indices = @transform_4, window_bounds = array<i64: 128, 1>}]} {
    %c0 = arith.constant 0 : index
    %c0_0 = arith.constant 0 : index
    %0 = vector.load %arg1[%c0, %c0_0] : memref<128x256xbf16, #tpu.memory_space<vmem>>, vector<128x256xbf16>
    %c0_1 = arith.constant 0 : index
    %c0_2 = arith.constant 0 : index
    %1 = vector.load %arg3[%c0_1, %c0_2] : memref<256x256xbf16, #tpu.memory_space<vmem>>, vector<256x256xbf16>
    %cst = arith.constant dense<0.000000e+00> : vector<128x256xf32>
    %2 = tpu.matmul %0, %1, %cst {dimension_numbers = #tpu.dot_dimension_numbers<[1], [0], [0], [1], [0, 0, 1, 1], [], []>} : vector<128x256xbf16>, vector<256x256xbf16>, vector<128x256xf32> -> vector<128x256xf32>
    %c0_3 = arith.constant 0 : index
    %c0_4 = arith.constant 0 : index
    %3 = vector.load %arg2[%c0_3, %c0_4] : memref<128x256xbf16, #tpu.memory_space<vmem>>, vector<128x256xbf16>
    %c0_5 = arith.constant 0 : index
    %c0_6 = arith.constant 0 : index
    %4 = vector.load %arg3[%c0_5, %c0_6] : memref<256x256xbf16, #tpu.memory_space<vmem>>, vector<256x256xbf16>
    %cst_7 = arith.constant dense<0.000000e+00> : vector<128x256xf32>
    %5 = tpu.matmul %3, %4, %cst_7 {dimension_numbers = #tpu.dot_dimension_numbers<[1], [0], [0], [1], [0, 0, 1, 1], [], []>} : vector<128x256xbf16>, vector<256x256xbf16>, vector<128x256xf32> -> vector<128x256xf32>
    %c0_8 = arith.constant 0 : index
    %c0_9 = arith.constant 0 : index
    %6 = vector.load %arg4[%c0_8, %c0_9] : memref<1x256xf32, #tpu.memory_space<vmem>>, vector<1x256xf32>
    %7 = vector.broadcast %6 : vector<1x256xf32> to vector<128x256xf32>
    %8 = arith.addf %2, %7 : vector<128x256xf32>
    %c0_10 = arith.constant 0 : index
    %c0_11 = arith.constant 0 : index
    %9 = vector.load %arg4[%c0_10, %c0_11] : memref<1x256xf32, #tpu.memory_space<vmem>>, vector<1x256xf32>
    %10 = vector.broadcast %9 : vector<1x256xf32> to vector<128x256xf32>
    %11 = arith.addf %5, %10 : vector<128x256xf32>
    %12 = arith.mulf %8, %11 : vector<128x256xf32>
    %cst_12 = arith.constant dense<0.000000e+00> : vector<128xf32>
    %13 = vector.multi_reduction <add>, %12, %cst_12 [1] : vector<128x256xf32> to vector<128xf32>
    %14 = vector.shape_cast %13 : vector<128xf32> to vector<128x1xf32>
    %15 = arith.mulf %8, %8 : vector<128x256xf32>
    %cst_13 = arith.constant dense<0.000000e+00> : vector<128xf32>
    %16 = vector.multi_reduction <add>, %15, %cst_13 [1] : vector<128x256xf32> to vector<128xf32>
    %17 = vector.shape_cast %16 : vector<128xf32> to vector<128x1xf32>
    %18 = arith.mulf %11, %11 : vector<128x256xf32>
    %cst_14 = arith.constant dense<0.000000e+00> : vector<128xf32>
    %19 = vector.multi_reduction <add>, %18, %cst_14 [1] : vector<128x256xf32> to vector<128xf32>
    %20 = vector.shape_cast %19 : vector<128xf32> to vector<128x1xf32>
    %21 = arith.mulf %17, %20 : vector<128x1xf32>
    %cst_15 = arith.constant 9.99999996E-13 : f32
    %22 = vector.broadcast %cst_15 : f32 to vector<128x1xf32>
    %23 = arith.maximumf %21, %22 : vector<128x1xf32>
    %24 = math.rsqrt %23 : vector<128x1xf32>
    %25 = arith.mulf %14, %24 : vector<128x1xf32>
    %c0_16 = arith.constant 0 : index
    %c0_17 = arith.constant 0 : index
    %26 = vector.load %arg5[%c0_16, %c0_17] : memref<128x1xf32, #tpu.memory_space<vmem>>, vector<128x1xf32>
    tpu.vector_store %arg5[%c0_16, %c0_17], %25 {strides = array<i32>} : memref<128x1xf32, #tpu.memory_space<vmem>>, vector<128x1xf32>,
    return
  }
  func.func @transform_0(%arg0: i32) -> (i32, i32) {
    %c0_i32 = arith.constant 0 : i32
    %c0_i32_0 = arith.constant 0 : i32
    return %arg0, %c0_i32 : i32, i32
  }
  func.func @transform_1(%arg0: i32) -> (i32, i32) {
    %c0_i32 = arith.constant 0 : i32
    %c0_i32_0 = arith.constant 0 : i32
    return %arg0, %c0_i32 : i32, i32
  }
  func.func @transform_2(%arg0: i32) -> (i32, i32) {
    %c0_i32 = arith.constant 0 : i32
    %c0_i32_0 = arith.constant 0 : i32
    %c0_i32_1 = arith.constant 0 : i32
    return %c0_i32, %c0_i32_0 : i32, i32
  }
  func.func @transform_3(%arg0: i32) -> (i32, i32) {
    %c0_i32 = arith.constant 0 : i32
    %c0_i32_0 = arith.constant 0 : i32
    %c0_i32_1 = arith.constant 0 : i32
    return %c0_i32, %c0_i32_0 : i32, i32
  }
  func.func @transform_4(%arg0: i32) -> (i32, i32) {
    %c0_i32 = arith.constant 0 : i32
    %c0_i32_0 = arith.constant 0 : i32
    return %arg0, %c0_i32 : i32, i32
  }
}

</mosaic_0001>

<llo_original>
// kernel: cosine_uttex.1
$region0: #{cosine_uttex.1}
  #allocation0 [shape = 'u32[]', space=smem, size = 0x4, offset = 0x4, fixed_abs, tag = 'smem constant byte address 0x4 - core index']
  #allocation1 [shape = 'u32[72,128]{1,0:T(1,128)}', space=vmem, size = 0x9000, scoped, tag = 'internal scratch']
  %s0 = inlined_call_operand.vmem [shape: bf16[128,256], index: 0, kind: input, shape index: {}]
  %s1 = inlined_call_operand.vmem [shape: bf16[128,256], index: 1, kind: input, shape index: {}]
  %s2 = inlined_call_operand.vmem [shape: bf16[256,256], index: 2, kind: input, shape index: {}]
  %s3 = inlined_call_operand.vmem [shape: f32[1,256], index: 3, kind: input, shape index: {}]
  %s4 = inlined_call_operand.vmem [shape: f32[128,1], index: 4, kind: output, shape index: {}]
  %s5 = sld [smem:[#allocation0]]
  $region26: #{cosine_uttex.1} parent=0
    _
  %s7 = ssub.s32 1, %s5
  %s8 = scalar_select 0, %s7, %s5
  // Predicated region
  $region2: #{cosine_uttex.1} parent=0 // pred_check
    _
  $region3: #{cosine_uttex.1} parent=0 // pred_check_branch
    %10 = sbr.rel (0) target = $region5
  $region4: #{cosine_uttex.1} parent=0 // pred_region
    _
  $region5: #{cosine_uttex.1} parent=0 // pred_fallthru
    _
  // Predicated region
  $region6: #{cosine_uttex.1} parent=0 // pred_check
    _
  $region7: #{cosine_uttex.1} parent=0 // pred_check_branch
    %12 = sbr.rel (0) target = $region9
  $region8: #{cosine_uttex.1} parent=0 // pred_region
    _
  $region9: #{cosine_uttex.1} parent=0 // pred_fallthru
    _
  // Predicated region
  $region10: #{cosine_uttex.1} parent=0 // pred_check
    _
  $region11: #{cosine_uttex.1} parent=0 // pred_check_branch
    %14 = sbr.rel (0) target = $region13
  $region12: #{cosine_uttex.1} parent=0 // pred_region
    _
  $region13: #{cosine_uttex.1} parent=0 // pred_fallthru
    _
  // Predicated region
  $region14: #{cosine_uttex.1} parent=0 // pred_check
    _
  $region15: #{cosine_uttex.1} parent=0 // pred_check_branch
    %16 = sbr.rel (0) target = $region17
  $region16: #{cosine_uttex.1} parent=0 // pred_region
    _
  $region17: #{cosine_uttex.1} parent=0 // pred_fallthru
    _
  %v17 = vld [vmem:[%s0] sm:$0xff]
  %v18 = vld [vmem:[%s0 + $0x8] sm:$0xff]
  %v19 = vld [vmem:[%s0 + $0x10] sm:$0xff]
  %v20 = vld [vmem:[%s0 + $0x18] sm:$0xff]
  %v21 = vld [vmem:[%s0 + $0x20] sm:$0xff]
  %v22 = vld [vmem:[%s0 + $0x28] sm:$0xff]
  %v23 = vld [vmem:[%s0 + $0x30] sm:$0xff]
  %v24 = vld [vmem:[%s0 + $0x38] sm:$0xff]
  %v25 = vld [vmem:[%s0 + $0x40] sm:$0xff]
  %v26 = vld [vmem:[%s0 + $0x48] sm:$0xff]
  %v27 = vld [vmem:[%s0 + $0x50] sm:$0xff]
  %v28 = vld [vmem:[%s0 + $0x58] sm:$0xff]
  %v29 = vld [vmem:[%s0 + $0x60] sm:$0xff]
  %v30 = vld [vmem:[%s0 + $0x68] sm:$0xff]
  %v31 = vld [vmem:[%s0 + $0x70] sm:$0xff]
  %v32 = vld [vmem:[%s0 + $0x78] sm:$0xff]
  %v33 = vld [vmem:[%s2] sm:$0xff]
  %v34 = vld [vmem:[%s2 + $0x8] sm:$0xff]
  %v35 = vld [vmem:[%s2 + $0x10] sm:$0xff]
  %v36 = vld [vmem:[%s2 + $0x18] sm:$0xff]
  %v37 = vld [vmem:[%s2 + $0x20] sm:$0xff]
  %v38 = vld [vmem:[%s2 + $0x28] sm:$0xff]
  %v39 = vld [vmem:[%s2 + $0x30] sm:$0xff]
  %v40 = vld [vmem:[%s2 + $0x38] sm:$0xff]
  %v41 = vld [vmem:[%s2 + $0x40] sm:$0xff]
  %v42 = vld [vmem:[%s2 + $0x48] sm:$0xff]
  %v43 = vld [vmem:[%s2 + $0x50] sm:$0xff]
  %v44 = vld [vmem:[%s2 + $0x58] sm:$0xff]
  %v45 = vld [vmem:[%s2 + $0x60] sm:$0xff]
  %v46 = vld [vmem:[%s2 + $0x68] sm:$0xff]
  %v47 = vld [vmem:[%s2 + $0x70] sm:$0xff]
  %v48 = vld [vmem:[%s2 + $0x78] sm:$0xff]
  %v49 = vld [vmem:[%s2 + $0x80] sm:$0xff]
  %v50 = vld [vmem:[%s2 + $0x88] sm:$0xff]
  %v51 = vld [vmem:[%s2 + $0x90] sm:$0xff]
  %v52 = vld [vmem:[%s2 + $0x98] sm:$0xff]
  %v53 = vld [vmem:[%s2 + $0xa0] sm:$0xff]
  %v54 = vld [vmem:[%s2 + $0xa8] sm:$0xff]
  %v55 = vld [vmem:[%s2 + $0xb0] sm:$0xff]
  %v56 = vld [vmem:[%s2 + $0xb8] sm:$0xff]
  %v57 = vld [vmem:[%s2 + $0xc0] sm:$0xff]
  %v58 = vld [vmem:[%s2 + $0xc8] sm:$0xff]
  %v59 = vld [vmem:[%s2 + $0xd0] sm:$0xff]
  %v60 = vld [vmem:[%s2 + $0xd8] sm:$0xff]
  %v61 = vld [vmem:[%s2 + $0xe0] sm:$0xff]
  %v62 = vld [vmem:[%s2 + $0xe8] sm:$0xff]
  %v63 = vld [vmem:[%s2 + $0xf0] sm:$0xff]
  %v64 = vld [vmem:[%s2 + $0xf8] sm:$0xff]
  %v65 = vld [vmem:[%s1] sm:$0xff]
  %v66 = vld [vmem:[%s1 + $0x8] sm:$0xff]
  %v67 = vld [vmem:[%s1 + $0x10] sm:$0xff]
  %v68 = vld [vmem:[%s1 + $0x18] sm:$0xff]
  %v69 = vld [vmem:[%s1 + $0x20] sm:$0xff]
  %v70 = vld [vmem:[%s1 + $0x28] sm:$0xff]
  %v71 = vld [vmem:[%s1 + $0x30] sm:$0xff]
  %v72 = vld [vmem:[%s1 + $0x38] sm:$0xff]
  %v73 = vld [vmem:[%s1 + $0x40] sm:$0xff]
  %v74 = vld [vmem:[%s1 + $0x48] sm:$0xff]
  %v75 = vld [vmem:[%s1 + $0x50] sm:$0xff]
  %v76 = vld [vmem:[%s1 + $0x58] sm:$0xff]
  %v77 = vld [vmem:[%s1 + $0x60] sm:$0xff]
  %v78 = vld [vmem:[%s1 + $0x68] sm:$0xff]
  %v79 = vld [vmem:[%s1 + $0x70] sm:$0xff]
  %v80 = vld [vmem:[%s1 + $0x78] sm:$0xff]
  %v81 = vld [vmem:[%s3] sm:$0x3]
  %v83 = vperm.slane %v81, 0
  %v84 = vperm.slane %v81, 1
  %v103 = vunpack.c.l.b16 %v17
  %v104 = vunpack.c.h.b16 %v17
  %v105 = vunpack.c.l.b16 %v18
  %v106 = vunpack.c.h.b16 %v18
  %v107 = vunpack.c.l.b16 %v19
  %v108 = vunpack.c.h.b16 %v19
  %v109 = vunpack.c.l.b16 %v20
  %v110 = vunpack.c.h.b16 %v20
  %v111 = vunpack.c.l.b16 %v21
  %v112 = vunpack.c.h.b16 %v21
  %v113 = vunpack.c.l.b16 %v22
  %v114 = vunpack.c.h.b16 %v22
  %v115 = vunpack.c.l.b16 %v23
  %v116 = vunpack.c.h.b16 %v23
  %v117 = vunpack.c.l.b16 %v24
  %v118 = vunpack.c.h.b16 %v24
  %v119 = vunpack.c.l.b16 %v25
  %v120 = vunpack.c.h.b16 %v25
  %v121 = vunpack.c.l.b16 %v26
  %v122 = vunpack.c.h.b16 %v26
  %v123 = vunpack.c.l.b16 %v27
  %v124 = vunpack.c.h.b16 %v27
  %v125 = vunpack.c.l.b16 %v28
  %v126 = vunpack.c.h.b16 %v28
  %v127 = vunpack.c.l.b16 %v29
  %v128 = vunpack.c.h.b16 %v29
  %v129 = vunpack.c.l.b16 %v30
  %v130 = vunpack.c.h.b16 %v30
  %v131 = vunpack.c.l.b16 %v31
  %v132 = vunpack.c.h.b16 %v31
  %v133 = vunpack.c.l.b16 %v32
  %v134 = vunpack.c.h.b16 %v32
  %v135 = vpack.c.b16 %v105, %v103
  %v136 = vpack.c.b16 %v106, %v104
  %v137 = vpack.c.b16 %v109, %v107
  %v138 = vpack.c.b16 %v110, %v108
  %v139 = vpack.c.b16 %v113, %v111
  %v140 = vpack.c.b16 %v114, %v112
  %v141 = vpack.c.b16 %v117, %v115
  %v142 = vpack.c.b16 %v118, %v116
  %v143 = vpack.c.b16 %v121, %v119
  %v144 = vpack.c.b16 %v122, %v120
  %v145 = vpack.c.b16 %v125, %v123
  %v146 = vpack.c.b16 %v126, %v124
  %v147 = vpack.c.b16 %v129, %v127
  %v148 = vpack.c.b16 %v130, %v128
  %v149 = vpack.c.b16 %v133, %v131
  %v150 = vpack.c.b16 %v134, %v132
  %v199 = vunpack.c.l.b16 %v33
  %v200 = vunpack.c.h.b16 %v33
  %v201 = vunpack.c.l.b16 %v34
  %v202 = vunpack.c.h.b16 %v34
  %v203 = vunpack.c.l.b16 %v35
  %v204 = vunpack.c.h.b16 %v35
  %v205 = vunpack.c.l.b16 %v36
  %v206 = vunpack.c.h.b16 %v36
  %v207 = vunpack.c.l.b16 %v37
  %v208 = vunpack.c.h.b16 %v37
  %v209 = vunpack.c.l.b16 %v38
  %v210 = vunpack.c.h.b16 %v38
  %v211 = vunpack.c.l.b16 %v39
  %v212 = vunpack.c.h.b16 %v39
  %v213 = vunpack.c.l.b16 %v40
  %v214 = vunpack.c.h.b16 %v40
  %v215 = vunpack.c.l.b16 %v41
  %v216 = vunpack.c.h.b16 %v41
  %v217 = vunpack.c.l.b16 %v42
  %v218 = vunpack.c.h.b16 %v42
  %v219 = vunpack.c.l.b16 %v43
  %v220 = vunpack.c.h.b16 %v43
  %v221 = vunpack.c.l.b16 %v44
  %v222 = vunpack.c.h.b16 %v44
  %v223 = vunpack.c.l.b16 %v45
  %v224 = vunpack.c.h.b16 %v45
  %v225 = vunpack.c.l.b16 %v46
  %v226 = vunpack.c.h.b16 %v46
  %v227 = vunpack.c.l.b16 %v47
  %v228 = vunpack.c.h.b16 %v47
  %v229 = vunpack.c.l.b16 %v48
  %v230 = vunpack.c.h.b16 %v48
  %v231 = vunpack.c.l.b16 %v49
  %v232 = vunpack.c.h.b16 %v49
  %v233 = vunpack.c.l.b16 %v50
  %v234 = vunpack.c.h.b16 %v50
  %v235 = vunpack.c.l.b16 %v51
  %v236 = vunpack.c.h.b16 %v51
  %v237 = vunpack.c.l.b16 %v52
  %v238 = vunpack.c.h.b16 %v52
  %v239 = vunpack.c.l.b16 %v53
  %v240 = vunpack.c.h.b16 %v53
  %v241 = vunpack.c.l.b16 %v54
  %v242 = vunpack.c.h.b16 %v54
  %v243 = vunpack.c.l.b16 %v55
  %v244 = vunpack.c.h.b16 %v55
  %v245 = vunpack.c.l.b16 %v56
  %v246 = vunpack.c.h.b16 %v56
  %v247 = vunpack.c.l.b16 %v57
  %v248 = vunpack.c.h.b16 %v57
  %v249 = vunpack.c.l.b16 %v58
  %v250 = vunpack.c.h.b16 %v58
  %v251 = vunpack.c.l.b16 %v59
  %v252 = vunpack.c.h.b16 %v59
  %v253 = vunpack.c.l.b16 %v60
  %v254 = vunpack.c.h.b16 %v60
  %v255 = vunpack.c.l.b16 %v61
  %v256 = vunpack.c.h.b16 %v61
  %v257 = vunpack.c.l.b16 %v62
  %v258 = vunpack.c.h.b16 %v62
  %v259 = vunpack.c.l.b16 %v63
  %v260 = vunpack.c.h.b16 %v63
  %v261 = vunpack.c.l.b16 %v64
  %v262 = vunpack.c.h.b16 %v64
  %v263 = vpack.c.b16 %v201, %v199
  %v264 = vpack.c.b16 %v202, %v200
  %v265 = vpack.c.b16 %v205, %v203
  %v266 = vpack.c.b16 %v206, %v204
  %v267 = vpack.c.b16 %v209, %v207
  %v268 = vpack.c.b16 %v210, %v208
  %v269 = vpack.c.b16 %v213, %v211
  %v270 = vpack.c.b16 %v214, %v212
  %v271 = vpack.c.b16 %v217, %v215
  %v272 = vpack.c.b16 %v218, %v216
  %v273 = vpack.c.b16 %v221, %v219
  %v274 = vpack.c.b16 %v222, %v220
  %v275 = vpack.c.b16 %v225, %v223
  %v276 = vpack.c.b16 %v226, %v224
  %v277 = vpack.c.b16 %v229, %v227
  %v278 = vpack.c.b16 %v230, %v228
  %v279 = vpack.c.b16 %v233, %v231
  %v280 = vpack.c.b16 %v234, %v232
  %v281 = vpack.c.b16 %v237, %v235
  %v282 = vpack.c.b16 %v238, %v236
  %v283 = vpack.c.b16 %v241, %v239
  %v284 = vpack.c.b16 %v242, %v240
  %v285 = vpack.c.b16 %v245, %v243
  %v286 = vpack.c.b16 %v246, %v244
  %v287 = vpack.c.b16 %v249, %v247
  %v288 = vpack.c.b16 %v250, %v248
  %v289 = vpack.c.b16 %v253, %v251
  %v290 = vpack.c.b16 %v254, %v252
  %v291 = vpack.c.b16 %v257, %v255
  %v292 = vpack.c.b16 %v258, %v256
  %v293 = vpack.c.b16 %v261, %v259
  %v294 = vpack.c.b16 %v262, %v260
  %327 = vmatpush.bf16.msra.mxu0 %v277
  %328 = vmatpush.bf16.msra.mxu0 %v275
  %329 = vmatpush.bf16.msra.mxu0 %v273
  %330 = vmatpush.bf16.msra.mxu0 %v271
  %331 = vmatpush.bf16.msra.mxu0 %v269
  %332 = vmatpush.bf16.msra.mxu0 %v267
  %333 = vmatpush.bf16.msra.mxu0 %v265
  %334 = vmatpush.bf16.msra.mxu0 %v263
  %335 = vmatmul.bf16.gmra.mxu0 %v135
  %v336 = vpop.f32.mrf.mxu0
  %v337 = vadd.f32 %v83, %v336
  %v338 = vpop.f32.mrf.mxu0
  %v339 = vadd.f32 %v83, %v338
  %340 = vmatmul.bf16.gmra.mxu0 %v137
  %v341 = vpop.f32.mrf.mxu0
  %v342 = vadd.f32 %v83, %v341
  %v343 = vpop.f32.mrf.mxu0
  %v344 = vadd.f32 %v83, %v343
  %345 = vmatmul.bf16.gmra.mxu0 %v139
  %v346 = vpop.f32.mrf.mxu0
  %v347 = vadd.f32 %v83, %v346
  %v348 = vpop.f32.mrf.mxu0
  %v349 = vadd.f32 %v83, %v348
  %350 = vmatmul.bf16.gmra.mxu0 %v141
  %v351 = vpop.f32.mrf.mxu0
  %v352 = vadd.f32 %v83, %v351
  %v353 = vpop.f32.mrf.mxu0
  %v354 = vadd.f32 %v83, %v353
  %355 = vmatmul.bf16.gmra.mxu0 %v143
  %v356 = vpop.f32.mrf.mxu0
  %v357 = vadd.f32 %v83, %v356
  %v358 = vpop.f32.mrf.mxu0
  %v359 = vadd.f32 %v83, %v358
  %360 = vmatmul.bf16.gmra.mxu0 %v145
  %v361 = vpop.f32.mrf.mxu0
  %v362 = vadd.f32 %v83, %v361
  %v363 = vpop.f32.mrf.mxu0
  %v364 = vadd.f32 %v83, %v363
  %365 = vmatmul.bf16.gmra.mxu0 %v147
  %v366 = vpop.f32.mrf.mxu0
  %v367 = vadd.f32 %v83, %v366
  %v368 = vpop.f32.mrf.mxu0
  %v369 = vadd.f32 %v83, %v368
  %370 = vmatmul.bf16.gmra.mxu0 %v149
  %v371 = vpop.f32.mrf.mxu0
  %v372 = vadd.f32 %v83, %v371
  %v373 = vpop.f32.mrf.mxu0
  %v374 = vadd.f32 %v83, %v373
  %375 = vdwg.mxu0
  %376 = vmatpush.bf16.msra.mxu0 %v293
  %377 = vmatpush.bf16.msra.mxu0 %v291
  %378 = vmatpush.bf16.msra.mxu0 %v289
  %379 = vmatpush.bf16.msra.mxu0 %v287
  %380 = vmatpush.bf16.msra.mxu0 %v285
  %381 = vmatpush.bf16.msra.mxu0 %v283
  %382 = vmatpush.bf16.msra.mxu0 %v281
  %383 = vmatpush.bf16.msra.mxu0 %v279
  %384 = vmatmul.bf16.gmra.mxu0 %v136
  %v385 = vpop.f32.mrf.mxu0
  %v386 = vadd.f32 %v337, %v385
  %v387 = vpop.f32.mrf.mxu0
  %v388 = vadd.f32 %v339, %v387
  %389 = vmatmul.bf16.gmra.mxu0 %v138
  %v390 = vpop.f32.mrf.mxu0
  %v391 = vadd.f32 %v342, %v390
  %v392 = vpop.f32.mrf.mxu0
  %v393 = vadd.f32 %v344, %v392
  %394 = vmatmul.bf16.gmra.mxu0 %v140
  %v395 = vpop.f32.mrf.mxu0
  %v396 = vadd.f32 %v347, %v395
  %v397 = vpop.f32.mrf.mxu0
  %v398 = vadd.f32 %v349, %v397
  %399 = vmatmul.bf16.gmra.mxu0 %v142
  %v400 = vpop.f32.mrf.mxu0
  %v401 = vadd.f32 %v352, %v400
  %v402 = vpop.f32.mrf.mxu0
  %v403 = vadd.f32 %v354, %v402
  %404 = vmatmul.bf16.gmra.mxu0 %v144
  %v405 = vpop.f32.mrf.mxu0
  %v406 = vadd.f32 %v357, %v405
  %v407 = vpop.f32.mrf.mxu0
  %v408 = vadd.f32 %v359, %v407
  %409 = vmatmul.bf16.gmra.mxu0 %v146
  %v410 = vpop.f32.mrf.mxu0
  %v411 = vadd.f32 %v362, %v410
  %v412 = vpop.f32.mrf.mxu0
  %v413 = vadd.f32 %v364, %v412
  %414 = vmatmul.bf16.gmra.mxu0 %v148
  %v415 = vpop.f32.mrf.mxu0
  %v416 = vadd.f32 %v367, %v415
  %v417 = vpop.f32.mrf.mxu0
  %v418 = vadd.f32 %v369, %v417
  %419 = vmatmul.bf16.gmra.mxu0 %v150
  %v420 = vpop.f32.mrf.mxu0
  %v421 = vadd.f32 %v372, %v420
  %v422 = vpop.f32.mrf.mxu0
  %v423 = vadd.f32 %v374, %v422
  %424 = vdwg.mxu0
  %425 = vmatpush.bf16.msra.mxu0 %v278
  %426 = vmatpush.bf16.msra.mxu0 %v276
  %427 = vmatpush.bf16.msra.mxu0 %v274
  %428 = vmatpush.bf16.msra.mxu0 %v272
  %429 = vmatpush.bf16.msra.mxu0 %v270
  %430 = vmatpush.bf16.msra.mxu0 %v268
  %431 = vmatpush.bf16.msra.mxu0 %v266
  %432 = vmatpush.bf16.msra.mxu0 %v264
  %433 = vmatmul.bf16.gmra.mxu0 %v135
  %v434 = vpop.f32.mrf.mxu0
  %v435 = vadd.f32 %v84, %v434
  %v436 = vpop.f32.mrf.mxu0
  %v437 = vadd.f32 %v84, %v436
  %438 = vmatmul.bf16.gmra.mxu0 %v137
  %v439 = vpop.f32.mrf.mxu0
  %v440 = vadd.f32 %v84, %v439
  %v441 = vpop.f32.mrf.mxu0
  %v442 = vadd.f32 %v84, %v441
  %443 = vmatmul.bf16.gmra.mxu0 %v139
  %v444 = vpop.f32.mrf.mxu0
  %v445 = vadd.f32 %v84, %v444
  %v446 = vpop.f32.mrf.mxu0
  %v447 = vadd.f32 %v84, %v446
  %448 = vmatmul.bf16.gmra.mxu0 %v141
  %v449 = vpop.f32.mrf.mxu0
  %v450 = vadd.f32 %v84, %v449
  %v451 = vpop.f32.mrf.mxu0
  %v452 = vadd.f32 %v84, %v451
  %453 = vmatmul.bf16.gmra.mxu0 %v143
  %v454 = vpop.f32.mrf.mxu0
  %v455 = vadd.f32 %v84, %v454
  %v456 = vpop.f32.mrf.mxu0
  %v457 = vadd.f32 %v84, %v456
  %458 = vmatmul.bf16.gmra.mxu0 %v145
  %v459 = vpop.f32.mrf.mxu0
  %v460 = vadd.f32 %v84, %v459
  %v461 = vpop.f32.mrf.mxu0
  %v462 = vadd.f32 %v84, %v461
  %463 = vmatmul.bf16.gmra.mxu0 %v147
  %v464 = vpop.f32.mrf.mxu0
  %v465 = vadd.f32 %v84, %v464
  %v466 = vpop.f32.mrf.mxu0
  %v467 = vadd.f32 %v84, %v466
  %468 = vmatmul.bf16.gmra.mxu0 %v149
  %v469 = vpop.f32.mrf.mxu0
  %v470 = vadd.f32 %v84, %v469
  %v471 = vpop.f32.mrf.mxu0
  %v472 = vadd.f32 %v84, %v471
  %473 = vdwg.mxu0
  %474 = vmatpush.bf16.msra.mxu0 %v294
  %475 = vmatpush.bf16.msra.mxu0 %v292
  %476 = vmatpush.bf16.msra.mxu0 %v290
  %477 = vmatpush.bf16.msra.mxu0 %v288
  %478 = vmatpush.bf16.msra.mxu0 %v286
  %479 = vmatpush.bf16.msra.mxu0 %v284
  %480 = vmatpush.bf16.msra.mxu0 %v282
  %481 = vmatpush.bf16.msra.mxu0 %v280
  %482 = vmatmul.bf16.gmra.mxu0 %v136
  %v483 = vpop.f32.mrf.mxu0
  %v484 = vadd.f32 %v435, %v483
  %v485 = vpop.f32.mrf.mxu0
  %v486 = vadd.f32 %v437, %v485
  %487 = vmatmul.bf16.gmra.mxu0 %v138
  %v488 = vpop.f32.mrf.mxu0
  %v489 = vadd.f32 %v440, %v488
  %v490 = vpop.f32.mrf.mxu0
  %v491 = vadd.f32 %v442, %v490
  %492 = vmatmul.bf16.gmra.mxu0 %v140
  %v493 = vpop.f32.mrf.mxu0
  %v494 = vadd.f32 %v445, %v493
  %v495 = vpop.f32.mrf.mxu0
  %v496 = vadd.f32 %v447, %v495
  %497 = vmatmul.bf16.gmra.mxu0 %v142
  %v498 = vpop.f32.mrf.mxu0
  %v499 = vadd.f32 %v450, %v498
  %v500 = vpop.f32.mrf.mxu0
  %v501 = vadd.f32 %v452, %v500
  %502 = vmatmul.bf16.gmra.mxu0 %v144
  %v503 = vpop.f32.mrf.mxu0
  %v504 = vadd.f32 %v455, %v503
  %v505 = vpop.f32.mrf.mxu0
  %v506 = vadd.f32 %v457, %v505
  %507 = vmatmul.bf16.gmra.mxu0 %v146
  %v508 = vpop.f32.mrf.mxu0
  %v509 = vadd.f32 %v460, %v508
  %v510 = vpop.f32.mrf.mxu0
  %v511 = vadd.f32 %v462, %v510
  %512 = vmatmul.bf16.gmra.mxu0 %v148
  %v513 = vpop.f32.mrf.mxu0
  %v514 = vadd.f32 %v465, %v513
  %v515 = vpop.f32.mrf.mxu0
  %v516 = vadd.f32 %v467, %v515
  %517 = vmatmul.bf16.gmra.mxu0 %v150
  %v518 = vpop.f32.mrf.mxu0
  %v519 = vadd.f32 %v470, %v518
  %v520 = vpop.f32.mrf.mxu0
  %v521 = vadd.f32 %v472, %v520
  %522 = vdwg.mxu0
  %v539 = vunpack.c.l.b16 %v65
  %v540 = vunpack.c.h.b16 %v65
  %v541 = vunpack.c.l.b16 %v66
  %v542 = vunpack.c.h.b16 %v66
  %v543 = vunpack.c.l.b16 %v67
  %v544 = vunpack.c.h.b16 %v67
  %v545 = vunpack.c.l.b16 %v68
  %v546 = vunpack.c.h.b16 %v68
  %v547 = vunpack.c.l.b16 %v69
  %v548 = vunpack.c.h.b16 %v69
  %v549 = vunpack.c.l.b16 %v70
  %v550 = vunpack.c.h.b16 %v70
  %v551 = vunpack.c.l.b16 %v71
  %v552 = vunpack.c.h.b16 %v71
  %v553 = vunpack.c.l.b16 %v72
  %v554 = vunpack.c.h.b16 %v72
  %v555 = vunpack.c.l.b16 %v73
  %v556 = vunpack.c.h.b16 %v73
  %v557 = vunpack.c.l.b16 %v74
  %v558 = vunpack.c.h.b16 %v74
  %v559 = vunpack.c.l.b16 %v75
  %v560 = vunpack.c.h.b16 %v75
  %v561 = vunpack.c.l.b16 %v76
  %v562 = vunpack.c.h.b16 %v76
  %v563 = vunpack.c.l.b16 %v77
  %v564 = vunpack.c.h.b16 %v77
  %v565 = vunpack.c.l.b16 %v78
  %v566 = vunpack.c.h.b16 %v78
  %v567 = vunpack.c.l.b16 %v79
  %v568 = vunpack.c.h.b16 %v79
  %v569 = vunpack.c.l.b16 %v80
  %v570 = vunpack.c.h.b16 %v80
  %v571 = vpack.c.b16 %v541, %v539
  %v572 = vpack.c.b16 %v542, %v540
  %v573 = vpack.c.b16 %v545, %v543
  %v574 = vpack.c.b16 %v546, %v544
  %v575 = vpack.c.b16 %v549, %v547
  %v576 = vpack.c.b16 %v550, %v548
  %v577 = vpack.c.b16 %v553, %v551
  %v578 = vpack.c.b16 %v554, %v552
  %v579 = vpack.c.b16 %v557, %v555
  %v580 = vpack.c.b16 %v558, %v556
  %v581 = vpack.c.b16 %v561, %v559
  %v582 = vpack.c.b16 %v562, %v560
  %v583 = vpack.c.b16 %v565, %v563
  %v584 = vpack.c.b16 %v566, %v564
  %v585 = vpack.c.b16 %v569, %v567
  %v586 = vpack.c.b16 %v570, %v568
  %603 = vmatpush.bf16.msra.mxu0 %v277
  %604 = vmatpush.bf16.msra.mxu0 %v275
  %605 = vmatpush.bf16.msra.mxu0 %v273
  %606 = vmatpush.bf16.msra.mxu0 %v271
  %607 = vmatpush.bf16.msra.mxu0 %v269
  %608 = vmatpush.bf16.msra.mxu0 %v267
  %609 = vmatpush.bf16.msra.mxu0 %v265
  %610 = vmatpush.bf16.msra.mxu0 %v263
  %611 = vmatmul.bf16.gmra.mxu0 %v571
  %v612 = vpop.f32.mrf.mxu0
  %v613 = vadd.f32 %v83, %v612
  %v614 = vpop.f32.mrf.mxu0
  %v615 = vadd.f32 %v83, %v614
  %616 = vmatmul.bf16.gmra.mxu0 %v573
  %v617 = vpop.f32.mrf.mxu0
  %v618 = vadd.f32 %v83, %v617
  %v619 = vpop.f32.mrf.mxu0
  %v620 = vadd.f32 %v83, %v619
  %621 = vmatmul.bf16.gmra.mxu0 %v575
  %v622 = vpop.f32.mrf.mxu0
  %v623 = vadd.f32 %v83, %v622
  %v624 = vpop.f32.mrf.mxu0
  %v625 = vadd.f32 %v83, %v624
  %626 = vmatmul.bf16.gmra.mxu0 %v577
  %v627 = vpop.f32.mrf.mxu0
  %v628 = vadd.f32 %v83, %v627
  %v629 = vpop.f32.mrf.mxu0
  %v630 = vadd.f32 %v83, %v629
  %631 = vmatmul.bf16.gmra.mxu0 %v579
  %v632 = vpop.f32.mrf.mxu0
  %v633 = vadd.f32 %v83, %v632
  %v634 = vpop.f32.mrf.mxu0
  %v635 = vadd.f32 %v83, %v634
  %636 = vmatmul.bf16.gmra.mxu0 %v581
  %v637 = vpop.f32.mrf.mxu0
  %v638 = vadd.f32 %v83, %v637
  %v639 = vpop.f32.mrf.mxu0
  %v640 = vadd.f32 %v83, %v639
  %641 = vmatmul.bf16.gmra.mxu0 %v583
  %v642 = vpop.f32.mrf.mxu0
  %v643 = vadd.f32 %v83, %v642
  %v644 = vpop.f32.mrf.mxu0
  %v645 = vadd.f32 %v83, %v644
  %646 = vmatmul.bf16.gmra.mxu0 %v585
  %v647 = vpop.f32.mrf.mxu0
  %v648 = vadd.f32 %v83, %v647
  %v649 = vpop.f32.mrf.mxu0
  %v650 = vadd.f32 %v83, %v649
  %651 = vdwg.mxu0
  %652 = vmatpush.bf16.msra.mxu0 %v293
  %653 = vmatpush.bf16.msra.mxu0 %v291
  %654 = vmatpush.bf16.msra.mxu0 %v289
  %655 = vmatpush.bf16.msra.mxu0 %v287
  %656 = vmatpush.bf16.msra.mxu0 %v285
  %657 = vmatpush.bf16.msra.mxu0 %v283
  %658 = vmatpush.bf16.msra.mxu0 %v281
  %659 = vmatpush.bf16.msra.mxu0 %v279
  %660 = vmatmul.bf16.gmra.mxu0 %v572
  %v661 = vpop.f32.mrf.mxu0
  %v662 = vadd.f32 %v613, %v661
  %v663 = vpop.f32.mrf.mxu0
  %v664 = vadd.f32 %v615, %v663
  %665 = vmatmul.bf16.gmra.mxu0 %v574
  %v666 = vpop.f32.mrf.mxu0
  %v667 = vadd.f32 %v618, %v666
  %v668 = vpop.f32.mrf.mxu0
  %v669 = vadd.f32 %v620, %v668
  %670 = vmatmul.bf16.gmra.mxu0 %v576
  %v671 = vpop.f32.mrf.mxu0
  %v672 = vadd.f32 %v623, %v671
  %v673 = vpop.f32.mrf.mxu0
  %v674 = vadd.f32 %v625, %v673
  %675 = vmatmul.bf16.gmra.mxu0 %v578
  %v676 = vpop.f32.mrf.mxu0
  %v677 = vadd.f32 %v628, %v676
  %v678 = vpop.f32.mrf.mxu0
  %v679 = vadd.f32 %v630, %v678
  %680 = vmatmul.bf16.gmra.mxu0 %v580
  %v681 = vpop.f32.mrf.mxu0
  %v682 = vadd.f32 %v633, %v681
  %v683 = vpop.f32.mrf.mxu0
  %v684 = vadd.f32 %v635, %v683
  %685 = vmatmul.bf16.gmra.mxu0 %v582
  %v686 = vpop.f32.mrf.mxu0
  %v687 = vadd.f32 %v638, %v686
  %v688 = vpop.f32.mrf.mxu0
  %v689 = vadd.f32 %v640, %v688
  %690 = vmatmul.bf16.gmra.mxu0 %v584
  %v691 = vpop.f32.mrf.mxu0
  %v692 = vadd.f32 %v643, %v691
  %v693 = vpop.f32.mrf.mxu0
  %v694 = vadd.f32 %v645, %v693
  %695 = vmatmul.bf16.gmra.mxu0 %v586
  %v696 = vpop.f32.mrf.mxu0
  %v697 = vadd.f32 %v648, %v696
  %v698 = vpop.f32.mrf.mxu0
  %v699 = vadd.f32 %v650, %v698
  %700 = vdwg.mxu0
  %701 = vmatpush.bf16.msra.mxu0 %v278
  %702 = vmatpush.bf16.msra.mxu0 %v276
  %703 = vmatpush.bf16.msra.mxu0 %v274
  %704 = vmatpush.bf16.msra.mxu0 %v272
  %705 = vmatpush.bf16.msra.mxu0 %v270
  %706 = vmatpush.bf16.msra.mxu0 %v268
  %707 = vmatpush.bf16.msra.mxu0 %v266
  %708 = vmatpush.bf16.msra.mxu0 %v264
  %709 = vmatmul.bf16.gmra.mxu0 %v571
  %v710 = vpop.f32.mrf.mxu0
  %v711 = vadd.f32 %v84, %v710
  %v712 = vpop.f32.mrf.mxu0
  %v713 = vadd.f32 %v84, %v712
  %714 = vmatmul.bf16.gmra.mxu0 %v573
  %v715 = vpop.f32.mrf.mxu0
  %v716 = vadd.f32 %v84, %v715
  %v717 = vpop.f32.mrf.mxu0
  %v718 = vadd.f32 %v84, %v717
  %719 = vmatmul.bf16.gmra.mxu0 %v575
  %v720 = vpop.f32.mrf.mxu0
  %v721 = vadd.f32 %v84, %v720
  %v722 = vpop.f32.mrf.mxu0
  %v723 = vadd.f32 %v84, %v722
  %724 = vmatmul.bf16.gmra.mxu0 %v577
  %v725 = vpop.f32.mrf.mxu0
  %v726 = vadd.f32 %v84, %v725
  %v727 = vpop.f32.mrf.mxu0
  %v728 = vadd.f32 %v84, %v727
  %729 = vmatmul.bf16.gmra.mxu0 %v579
  %v730 = vpop.f32.mrf.mxu0
  %v731 = vadd.f32 %v84, %v730
  %v732 = vpop.f32.mrf.mxu0
  %v733 = vadd.f32 %v84, %v732
  %734 = vmatmul.bf16.gmra.mxu0 %v581
  %v735 = vpop.f32.mrf.mxu0
  %v736 = vadd.f32 %v84, %v735
  %v737 = vpop.f32.mrf.mxu0
  %v738 = vadd.f32 %v84, %v737
  %739 = vmatmul.bf16.gmra.mxu0 %v583
  %v740 = vpop.f32.mrf.mxu0
  %v741 = vadd.f32 %v84, %v740
  %v742 = vpop.f32.mrf.mxu0
  %v743 = vadd.f32 %v84, %v742
  %744 = vmatmul.bf16.gmra.mxu0 %v585
  %v745 = vpop.f32.mrf.mxu0
  %v746 = vadd.f32 %v84, %v745
  %v747 = vpop.f32.mrf.mxu0
  %v748 = vadd.f32 %v84, %v747
  %749 = vdwg.mxu0
  %750 = vmatpush.bf16.msra.mxu0 %v294
  %751 = vmatpush.bf16.msra.mxu0 %v292
  %752 = vmatpush.bf16.msra.mxu0 %v290
  %753 = vmatpush.bf16.msra.mxu0 %v288
  %754 = vmatpush.bf16.msra.mxu0 %v286
  %755 = vmatpush.bf16.msra.mxu0 %v284
  %756 = vmatpush.bf16.msra.mxu0 %v282
  %757 = vmatpush.bf16.msra.mxu0 %v280
  %758 = vmatmul.bf16.gmra.mxu0 %v572
  %v759 = vpop.f32.mrf.mxu0
  %v760 = vadd.f32 %v711, %v759
  %v761 = vpop.f32.mrf.mxu0
  %v762 = vadd.f32 %v713, %v761
  %763 = vmatmul.bf16.gmra.mxu0 %v574
  %v764 = vpop.f32.mrf.mxu0
  %v765 = vadd.f32 %v716, %v764
  %v766 = vpop.f32.mrf.mxu0
  %v767 = vadd.f32 %v718, %v766
  %768 = vmatmul.bf16.gmra.mxu0 %v576
  %v769 = vpop.f32.mrf.mxu0
  %v770 = vadd.f32 %v721, %v769
  %v771 = vpop.f32.mrf.mxu0
  %v772 = vadd.f32 %v723, %v771
  %773 = vmatmul.bf16.gmra.mxu0 %v578
  %v774 = vpop.f32.mrf.mxu0
  %v775 = vadd.f32 %v726, %v774
  %v776 = vpop.f32.mrf.mxu0
  %v777 = vadd.f32 %v728, %v776
  %778 = vmatmul.bf16.gmra.mxu0 %v580
  %v779 = vpop.f32.mrf.mxu0
  %v780 = vadd.f32 %v731, %v779
  %v781 = vpop.f32.mrf.mxu0
  %v782 = vadd.f32 %v733, %v781
  %783 = vmatmul.bf16.gmra.mxu0 %v582
  %v784 = vpop.f32.mrf.mxu0
  %v785 = vadd.f32 %v736, %v784
  %v786 = vpop.f32.mrf.mxu0
  %v787 = vadd.f32 %v738, %v786
  %788 = vmatmul.bf16.gmra.mxu0 %v584
  %v789 = vpop.f32.mrf.mxu0
  %v790 = vadd.f32 %v741, %v789
  %v791 = vpop.f32.mrf.mxu0
  %v792 = vadd.f32 %v743, %v791
  %793 = vmatmul.bf16.gmra.mxu0 %v586
  %v794 = vpop.f32.mrf.mxu0
  %v795 = vadd.f32 %v746, %v794
  %v796 = vpop.f32.mrf.mxu0
  %v797 = vadd.f32 %v748, %v796
  %798 = vdwg.mxu0
  %v799 = vmul.f32 %v386, %v662
  %v800 = vmul.f32 %v484, %v760
  %v801 = vmul.f32 %v388, %v664
  %v802 = vmul.f32 %v486, %v762
  %v803 = vmul.f32 %v391, %v667
  %v804 = vmul.f32 %v489, %v765
  %v805 = vmul.f32 %v393, %v669
  %v806 = vmul.f32 %v491, %v767
  %v807 = vmul.f32 %v396, %v672
  %v808 = vmul.f32 %v494, %v770
  %v809 = vmul.f32 %v398, %v674
  %v810 = vmul.f32 %v496, %v772
  %v811 = vmul.f32 %v401, %v677
  %v812 = vmul.f32 %v499, %v775
  %v813 = vmul.f32 %v403, %v679
  %v814 = vmul.f32 %v501, %v777
  %v815 = vmul.f32 %v406, %v682
  %v816 = vmul.f32 %v504, %v780
  %v817 = vmul.f32 %v408, %v684
  %v818 = vmul.f32 %v506, %v782
  %v819 = vmul.f32 %v411, %v687
  %v820 = vmul.f32 %v509, %v785
  %v821 = vmul.f32 %v413, %v689
  %v822 = vmul.f32 %v511, %v787
  %v823 = vmul.f32 %v416, %v692
  %v824 = vmul.f32 %v514, %v790
  %v825 = vmul.f32 %v418, %v694
  %v826 = vmul.f32 %v516, %v792
  %v827 = vmul.f32 %v421, %v697
  %v828 = vmul.f32 %v519, %v795
  %v829 = vmul.f32 %v423, %v699
  %v830 = vmul.f32 %v521, %v797
  %v831 = vadd.f32 %v799, %v800
  %832 = vadd.xlane.f32.xlu0 %v831
  %v833 = vpop.xlane.xlu0 %832
  %v834 = vadd.f32 %v801, %v802
  %835 = vadd.xlane.f32.xlu0 %v834
  %v836 = vpop.xlane.xlu0 %835
  %v837 = vadd.f32 %v803, %v804
  %838 = vadd.xlane.f32.xlu0 %v837
  %v839 = vpop.xlane.xlu0 %838
  %v840 = vadd.f32 %v805, %v806
  %841 = vadd.xlane.f32.xlu0 %v840
  %v842 = vpop.xlane.xlu0 %841
  %v843 = vadd.f32 %v807, %v808
  %844 = vadd.xlane.f32.xlu0 %v843
  %v845 = vpop.xlane.xlu0 %844
  %v846 = vadd.f32 %v809, %v810
  %847 = vadd.xlane.f32.xlu0 %v846
  %v848 = vpop.xlane.xlu0 %847
  %v849 = vadd.f32 %v811, %v812
  %850 = vadd.xlane.f32.xlu0 %v849
  %v851 = vpop.xlane.xlu0 %850
  %v852 = vadd.f32 %v813, %v814
  %853 = vadd.xlane.f32.xlu0 %v852
  %v854 = vpop.xlane.xlu0 %853
  %v855 = vadd.f32 %v815, %v816
  %856 = vadd.xlane.f32.xlu0 %v855
  %v857 = vpop.xlane.xlu0 %856
  %v858 = vadd.f32 %v817, %v818
  %859 = vadd.xlane.f32.xlu0 %v858
  %v860 = vpop.xlane.xlu0 %859
  %v861 = vadd.f32 %v819, %v820
  %862 = vadd.xlane.f32.xlu0 %v861
  %v863 = vpop.xlane.xlu0 %862
  %v864 = vadd.f32 %v821, %v822
  %865 = vadd.xlane.f32.xlu0 %v864
  %v866 = vpop.xlane.xlu0 %865
  %v867 = vadd.f32 %v823, %v824
  %868 = vadd.xlane.f32.xlu0 %v867
  %v869 = vpop.xlane.xlu0 %868
  %v870 = vadd.f32 %v825, %v826
  %871 = vadd.xlane.f32.xlu0 %v870
  %v872 = vpop.xlane.xlu0 %871
  %v873 = vadd.f32 %v827, %v828
  %874 = vadd.xlane.f32.xlu0 %v873
  %v875 = vpop.xlane.xlu0 %874
  %v876 = vadd.f32 %v829, %v830
  %877 = vadd.xlane.f32.xlu0 %v876
  %v878 = vpop.xlane.xlu0 %877
  %v879 = vmul.f32 %v386, %v386
  %v880 = vmul.f32 %v484, %v484
  %v881 = vmul.f32 %v388, %v388
  %v882 = vmul.f32 %v486, %v486
  %v883 = vmul.f32 %v391, %v391
  %v884 = vmul.f32 %v489, %v489
  %v885 = vmul.f32 %v393, %v393
  %v886 = vmul.f32 %v491, %v491
  %v887 = vmul.f32 %v396, %v396
  %v888 = vmul.f32 %v494, %v494
  %v889 = vmul.f32 %v398, %v398
  %v890 = vmul.f32 %v496, %v496
  %v891 = vmul.f32 %v401, %v401
  %v892 = vmul.f32 %v499, %v499
  %v893 = vmul.f32 %v403, %v403
  %v894 = vmul.f32 %v501, %v501
  %v895 = vmul.f32 %v406, %v406
  %v896 = vmul.f32 %v504, %v504
  %v897 = vmul.f32 %v408, %v408
  %v898 = vmul.f32 %v506, %v506
  %v899 = vmul.f32 %v411, %v411
  %v900 = vmul.f32 %v509, %v509
  %v901 = vmul.f32 %v413, %v413
  %v902 = vmul.f32 %v511, %v511
  %v903 = vmul.f32 %v416, %v416
  %v904 = vmul.f32 %v514, %v514
  %v905 = vmul.f32 %v418, %v418
  %v906 = vmul.f32 %v516, %v516
  %v907 = vmul.f32 %v421, %v421
  %v908 = vmul.f32 %v519, %v519
  %v909 = vmul.f32 %v423, %v423
  %v910 = vmul.f32 %v521, %v521
  %v911 = vadd.f32 %v879, %v880
  %912 = vadd.xlane.f32.xlu0 %v911
  %v913 = vpop.xlane.xlu0 %912
  %v914 = vadd.f32 %v881, %v882
  %915 = vadd.xlane.f32.xlu0 %v914
  %v916 = vpop.xlane.xlu0 %915
  %v917 = vadd.f32 %v883, %v884
  %918 = vadd.xlane.f32.xlu0 %v917
  %v919 = vpop.xlane.xlu0 %918
  %v920 = vadd.f32 %v885, %v886
  %921 = vadd.xlane.f32.xlu0 %v920
  %v922 = vpop.xlane.xlu0 %921
  %v923 = vadd.f32 %v887, %v888
  %924 = vadd.xlane.f32.xlu0 %v923
  %v925 = vpop.xlane.xlu0 %924
  %v926 = vadd.f32 %v889, %v890
  %927 = vadd.xlane.f32.xlu0 %v926
  %v928 = vpop.xlane.xlu0 %927
  %v929 = vadd.f32 %v891, %v892
  %930 = vadd.xlane.f32.xlu0 %v929
  %v931 = vpop.xlane.xlu0 %930
  %v932 = vadd.f32 %v893, %v894
  %933 = vadd.xlane.f32.xlu0 %v932
  %v934 = vpop.xlane.xlu0 %933
  %v935 = vadd.f32 %v895, %v896
  %936 = vadd.xlane.f32.xlu0 %v935
  %v937 = vpop.xlane.xlu0 %936
  %v938 = vadd.f32 %v897, %v898
  %939 = vadd.xlane.f32.xlu0 %v938
  %v940 = vpop.xlane.xlu0 %939
  %v941 = vadd.f32 %v899, %v900
  %942 = vadd.xlane.f32.xlu0 %v941
  %v943 = vpop.xlane.xlu0 %942
  %v944 = vadd.f32 %v901, %v902
  %945 = vadd.xlane.f32.xlu0 %v944
  %v946 = vpop.xlane.xlu0 %945
  %v947 = vadd.f32 %v903, %v904
  %948 = vadd.xlane.f32.xlu0 %v947
  %v949 = vpop.xlane.xlu0 %948
  %v950 = vadd.f32 %v905, %v906
  %951 = vadd.xlane.f32.xlu0 %v950
  %v952 = vpop.xlane.xlu0 %951
  %v953 = vadd.f32 %v907, %v908
  %954 = vadd.xlane.f32.xlu0 %v953
  %v955 = vpop.xlane.xlu0 %954
  %v956 = vadd.f32 %v909, %v910
  %957 = vadd.xlane.f32.xlu0 %v956
  %v958 = vpop.xlane.xlu0 %957
  %v959 = vmul.f32 %v662, %v662
  %v960 = vmul.f32 %v760, %v760
  %v961 = vmul.f32 %v664, %v664
  %v962 = vmul.f32 %v762, %v762
  %v963 = vmul.f32 %v667, %v667
  %v964 = vmul.f32 %v765, %v765
  %v965 = vmul.f32 %v669, %v669
  %v966 = vmul.f32 %v767, %v767
  %v967 = vmul.f32 %v672, %v672
  %v968 = vmul.f32 %v770, %v770
  %v969 = vmul.f32 %v674, %v674
  %v970 = vmul.f32 %v772, %v772
  %v971 = vmul.f32 %v677, %v677
  %v972 = vmul.f32 %v775, %v775
  %v973 = vmul.f32 %v679, %v679
  %v974 = vmul.f32 %v777, %v777
  %v975 = vmul.f32 %v682, %v682
  %v976 = vmul.f32 %v780, %v780
  %v977 = vmul.f32 %v684, %v684
  %v978 = vmul.f32 %v782, %v782
  %v979 = vmul.f32 %v687, %v687
  %v980 = vmul.f32 %v785, %v785
  %v981 = vmul.f32 %v689, %v689
  %v982 = vmul.f32 %v787, %v787
  %v983 = vmul.f32 %v692, %v692
  %v984 = vmul.f32 %v790, %v790
  %v985 = vmul.f32 %v694, %v694
  %v986 = vmul.f32 %v792, %v792
  %v987 = vmul.f32 %v697, %v697
  %v988 = vmul.f32 %v795, %v795
  %v989 = vmul.f32 %v699, %v699
  %v990 = vmul.f32 %v797, %v797
  %v991 = vadd.f32 %v959, %v960
  %992 = vadd.xlane.f32.xlu0 %v991
  %v993 = vpop.xlane.xlu0 %992
  %v994 = vadd.f32 %v961, %v962
  %995 = vadd.xlane.f32.xlu0 %v994
  %v996 = vpop.xlane.xlu0 %995
  %v997 = vadd.f32 %v963, %v964
  %998 = vadd.xlane.f32.xlu0 %v997
  %v999 = vpop.xlane.xlu0 %998
  %v1000 = vadd.f32 %v965, %v966
  %1001 = vadd.xlane.f32.xlu0 %v1000
  %v1002 = vpop.xlane.xlu0 %1001
  %v1003 = vadd.f32 %v967, %v968
  %1004 = vadd.xlane.f32.xlu0 %v1003
  %v1005 = vpop.xlane.xlu0 %1004
  %v1006 = vadd.f32 %v969, %v970
  %1007 = vadd.xlane.f32.xlu0 %v1006
  %v1008 = vpop.xlane.xlu0 %1007
  %v1009 = vadd.f32 %v971, %v972
  %1010 = vadd.xlane.f32.xlu0 %v1009
  %v1011 = vpop.xlane.xlu0 %1010
  %v1012 = vadd.f32 %v973, %v974
  %1013 = vadd.xlane.f32.xlu0 %v1012
  %v1014 = vpop.xlane.xlu0 %1013
  %v1015 = vadd.f32 %v975, %v976
  %1016 = vadd.xlane.f32.xlu0 %v1015
  %v1017 = vpop.xlane.xlu0 %1016
  %v1018 = vadd.f32 %v977, %v978
  %1019 = vadd.xlane.f32.xlu0 %v1018
  %v1020 = vpop.xlane.xlu0 %1019
  %v1021 = vadd.f32 %v979, %v980
  %1022 = vadd.xlane.f32.xlu0 %v1021
  %v1023 = vpop.xlane.xlu0 %1022
  %v1024 = vadd.f32 %v981, %v982
  %1025 = vadd.xlane.f32.xlu0 %v1024
  %v1026 = vpop.xlane.xlu0 %1025
  %v1027 = vadd.f32 %v983, %v984
  %1028 = vadd.xlane.f32.xlu0 %v1027
  %v1029 = vpop.xlane.xlu0 %1028
  %v1030 = vadd.f32 %v985, %v986
  %1031 = vadd.xlane.f32.xlu0 %v1030
  %v1032 = vpop.xlane.xlu0 %1031
  %v1033 = vadd.f32 %v987, %v988
  %1034 = vadd.xlane.f32.xlu0 %v1033
  %v1035 = vpop.xlane.xlu0 %1034
  %v1036 = vadd.f32 %v989, %v990
  %1037 = vadd.xlane.f32.xlu0 %v1036
  %v1038 = vpop.xlane.xlu0 %1037
  %v1039 = vmul.f32 %v913, %v993
  %v1040 = vmul.f32 %v916, %v996
  %v1041 = vmul.f32 %v919, %v999
  %v1042 = vmul.f32 %v922, %v1002
  %v1043 = vmul.f32 %v925, %v1005
  %v1044 = vmul.f32 %v928, %v1008
  %v1045 = vmul.f32 %v931, %v1011
  %v1046 = vmul.f32 %v934, %v1014
  %v1047 = vmul.f32 %v937, %v1017
  %v1048 = vmul.f32 %v940, %v1020
  %v1049 = vmul.f32 %v943, %v1023
  %v1050 = vmul.f32 %v946, %v1026
  %v1051 = vmul.f32 %v949, %v1029
  %v1052 = vmul.f32 %v952, %v1032
  %v1053 = vmul.f32 %v955, %v1035
  %v1054 = vmul.f32 %v958, %v1038
  %v1055 = vmax.f32 %v1039, 1e-12
  %v1056 = vmax.f32 %v1040, 1e-12
  %v1057 = vmax.f32 %v1041, 1e-12
  %v1058 = vmax.f32 %v1042, 1e-12
  %v1059 = vmax.f32 %v1043, 1e-12
  %v1060 = vmax.f32 %v1044, 1e-12
  %v1061 = vmax.f32 %v1045, 1e-12
  %v1062 = vmax.f32 %v1046, 1e-12
  %v1063 = vmax.f32 %v1047, 1e-12
  %v1064 = vmax.f32 %v1048, 1e-12
  %v1065 = vmax.f32 %v1049, 1e-12
  %v1066 = vmax.f32 %v1050, 1e-12
  %v1067 = vmax.f32 %v1051, 1e-12
  %v1068 = vmax.f32 %v1052, 1e-12
  %v1069 = vmax.f32 %v1053, 1e-12
  %v1070 = vmax.f32 %v1054, 1e-12
  %v1071 = vrsqrt.pop %v1055
  %v1072 = vmul.f32 %v1071, %v1055
  %v1073 = vmul.f32 %v1072, %v1071
  %v1074 = vmul.f32 0.5, %v1073
  %v1075 = vsub.f32 1.5, %v1074
  %v1076 = vmul.f32 %v1071, %v1075
  %vm1077 = vweird.f32 %v1055
  %vm1078 = vweird.f32 %v1071
  %vm1079 = vmor %vm1077, %vm1078
  %v1080 = vsel %vm1079, %v1071, %v1076
  %v1081 = vrsqrt.pop %v1056
  %v1082 = vmul.f32 %v1081, %v1056
  %v1083 = vmul.f32 %v1082, %v1081
  %v1084 = vmul.f32 0.5, %v1083
  %v1085 = vsub.f32 1.5, %v1084
  %v1086 = vmul.f32 %v1081, %v1085
  %vm1087 = vweird.f32 %v1056
  %vm1088 = vweird.f32 %v1081
  %vm1089 = vmor %vm1087, %vm1088
  %v1090 = vsel %vm1089, %v1081, %v1086
  %v1091 = vrsqrt.pop %v1057
  %v1092 = vmul.f32 %v1091, %v1057
  %v1093 = vmul.f32 %v1092, %v1091
  %v1094 = vmul.f32 0.5, %v1093
  %v1095 = vsub.f32 1.5, %v1094
  %v1096 = vmul.f32 %v1091, %v1095
  %vm1097 = vweird.f32 %v1057
  %vm1098 = vweird.f32 %v1091
  %vm1099 = vmor %vm1097, %vm1098
  %v1100 = vsel %vm1099, %v1091, %v1096
  %v1101 = vrsqrt.pop %v1058
  %v1102 = vmul.f32 %v1101, %v1058
  %v1103 = vmul.f32 %v1102, %v1101
  %v1104 = vmul.f32 0.5, %v1103
  %v1105 = vsub.f32 1.5, %v1104
  %v1106 = vmul.f32 %v1101, %v1105
  %vm1107 = vweird.f32 %v1058
  %vm1108 = vweird.f32 %v1101
  %vm1109 = vmor %vm1107, %vm1108
  %v1110 = vsel %vm1109, %v1101, %v1106
  %v1111 = vrsqrt.pop %v1059
  %v1112 = vmul.f32 %v1111, %v1059
  %v1113 = vmul.f32 %v1112, %v1111
  %v1114 = vmul.f32 0.5, %v1113
  %v1115 = vsub.f32 1.5, %v1114
  %v1116 = vmul.f32 %v1111, %v1115
  %vm1117 = vweird.f32 %v1059
  %vm1118 = vweird.f32 %v1111
  %vm1119 = vmor %vm1117, %vm1118
  %v1120 = vsel %vm1119, %v1111, %v1116
  %v1121 = vrsqrt.pop %v1060
  %v1122 = vmul.f32 %v1121, %v1060
  %v1123 = vmul.f32 %v1122, %v1121
  %v1124 = vmul.f32 0.5, %v1123
  %v1125 = vsub.f32 1.5, %v1124
  %v1126 = vmul.f32 %v1121, %v1125
  %vm1127 = vweird.f32 %v1060
  %vm1128 = vweird.f32 %v1121
  %vm1129 = vmor %vm1127, %vm1128
  %v1130 = vsel %vm1129, %v1121, %v1126
  %v1131 = vrsqrt.pop %v1061
  %v1132 = vmul.f32 %v1131, %v1061
  %v1133 = vmul.f32 %v1132, %v1131
  %v1134 = vmul.f32 0.5, %v1133
  %v1135 = vsub.f32 1.5, %v1134
  %v1136 = vmul.f32 %v1131, %v1135
  %vm1137 = vweird.f32 %v1061
  %vm1138 = vweird.f32 %v1131
  %vm1139 = vmor %vm1137, %vm1138
  %v1140 = vsel %vm1139, %v1131, %v1136
  %v1141 = vrsqrt.pop %v1062
  %v1142 = vmul.f32 %v1141, %v1062
  %v1143 = vmul.f32 %v1142, %v1141
  %v1144 = vmul.f32 0.5, %v1143
  %v1145 = vsub.f32 1.5, %v1144
  %v1146 = vmul.f32 %v1141, %v1145
  %vm1147 = vweird.f32 %v1062
  %vm1148 = vweird.f32 %v1141
  %vm1149 = vmor %vm1147, %vm1148
  %v1150 = vsel %vm1149, %v1141, %v1146
  %v1151 = vrsqrt.pop %v1063
  %v1152 = vmul.f32 %v1151, %v1063
  %v1153 = vmul.f32 %v1152, %v1151
  %v1154 = vmul.f32 0.5, %v1153
  %v1155 = vsub.f32 1.5, %v1154
  %v1156 = vmul.f32 %v1151, %v1155
  %vm1157 = vweird.f32 %v1063
  %vm1158 = vweird.f32 %v1151
  %vm1159 = vmor %vm1157, %vm1158
  %v1160 = vsel %vm1159, %v1151, %v1156
  %v1161 = vrsqrt.pop %v1064
  %v1162 = vmul.f32 %v1161, %v1064
  %v1163 = vmul.f32 %v1162, %v1161
  %v1164 = vmul.f32 0.5, %v1163
  %v1165 = vsub.f32 1.5, %v1164
  %v1166 = vmul.f32 %v1161, %v1165
  %vm1167 = vweird.f32 %v1064
  %vm1168 = vweird.f32 %v1161
  %vm1169 = vmor %vm1167, %vm1168
  %v1170 = vsel %vm1169, %v1161, %v1166
  %v1171 = vrsqrt.pop %v1065
  %v1172 = vmul.f32 %v1171, %v1065
  %v1173 = vmul.f32 %v1172, %v1171
  %v1174 = vmul.f32 0.5, %v1173
  %v1175 = vsub.f32 1.5, %v1174
  %v1176 = vmul.f32 %v1171, %v1175
  %vm1177 = vweird.f32 %v1065
  %vm1178 = vweird.f32 %v1171
  %vm1179 = vmor %vm1177, %vm1178
  %v1180 = vsel %vm1179, %v1171, %v1176
  %v1181 = vrsqrt.pop %v1066
  %v1182 = vmul.f32 %v1181, %v1066
  %v1183 = vmul.f32 %v1182, %v1181
  %v1184 = vmul.f32 0.5, %v1183
  %v1185 = vsub.f32 1.5, %v1184
  %v1186 = vmul.f32 %v1181, %v1185
  %vm1187 = vweird.f32 %v1066
  %vm1188 = vweird.f32 %v1181
  %vm1189 = vmor %vm1187, %vm1188
  %v1190 = vsel %vm1189, %v1181, %v1186
  %v1191 = vrsqrt.pop %v1067
  %v1192 = vmul.f32 %v1191, %v1067
  %v1193 = vmul.f32 %v1192, %v1191
  %v1194 = vmul.f32 0.5, %v1193
  %v1195 = vsub.f32 1.5, %v1194
  %v1196 = vmul.f32 %v1191, %v1195
  %vm1197 = vweird.f32 %v1067
  %vm1198 = vweird.f32 %v1191
  %vm1199 = vmor %vm1197, %vm1198
  %v1200 = vsel %vm1199, %v1191, %v1196
  %v1201 = vrsqrt.pop %v1068
  %v1202 = vmul.f32 %v1201, %v1068
  %v1203 = vmul.f32 %v1202, %v1201
  %v1204 = vmul.f32 0.5, %v1203
  %v1205 = vsub.f32 1.5, %v1204
  %v1206 = vmul.f32 %v1201, %v1205
  %vm1207 = vweird.f32 %v1068
  %vm1208 = vweird.f32 %v1201
  %vm1209 = vmor %vm1207, %vm1208
  %v1210 = vsel %vm1209, %v1201, %v1206
  %v1211 = vrsqrt.pop %v1069
  %v1212 = vmul.f32 %v1211, %v1069
  %v1213 = vmul.f32 %v1212, %v1211
  %v1214 = vmul.f32 0.5, %v1213
  %v1215 = vsub.f32 1.5, %v1214
  %v1216 = vmul.f32 %v1211, %v1215
  %vm1217 = vweird.f32 %v1069
  %vm1218 = vweird.f32 %v1211
  %vm1219 = vmor %vm1217, %vm1218
  %v1220 = vsel %vm1219, %v1211, %v1216
  %v1221 = vrsqrt.pop %v1070
  %v1222 = vmul.f32 %v1221, %v1070
  %v1223 = vmul.f32 %v1222, %v1221
  %v1224 = vmul.f32 0.5, %v1223
  %v1225 = vsub.f32 1.5, %v1224
  %v1226 = vmul.f32 %v1221, %v1225
  %vm1227 = vweird.f32 %v1070
  %vm1228 = vweird.f32 %v1221
  %vm1229 = vmor %vm1227, %vm1228
  %v1230 = vsel %vm1229, %v1221, %v1226
  %v1231 = vmul.f32 %v833, %v1080
  %v1232 = vmul.f32 %v836, %v1090
  %v1233 = vmul.f32 %v839, %v1100
  %v1234 = vmul.f32 %v842, %v1110
  %v1235 = vmul.f32 %v845, %v1120
  %v1236 = vmul.f32 %v848, %v1130
  %v1237 = vmul.f32 %v851, %v1140
  %v1238 = vmul.f32 %v854, %v1150
  %v1239 = vmul.f32 %v857, %v1160
  %v1240 = vmul.f32 %v860, %v1170
  %v1241 = vmul.f32 %v863, %v1180
  %v1242 = vmul.f32 %v866, %v1190
  %v1243 = vmul.f32 %v869, %v1200
  %v1244 = vmul.f32 %v872, %v1210
  %v1245 = vmul.f32 %v875, %v1220
  %v1246 = vmul.f32 %v878, %v1230
  %vm1247 = vcmask 7168
  %1248 = vst.msk [vmem:[%s4] sm:$0xff] %vm1247, %v1231
  %1249 = vst.msk [vmem:[%s4 + $0x8] sm:$0xff] %vm1247, %v1232
  %1250 = vst.msk [vmem:[%s4 + $0x10] sm:$0xff] %vm1247, %v1233
  %1251 = vst.msk [vmem:[%s4 + $0x18] sm:$0xff] %vm1247, %v1234
  %1252 = vst.msk [vmem:[%s4 + $0x20] sm:$0xff] %vm1247, %v1235
  %1253 = vst.msk [vmem:[%s4 + $0x28] sm:$0xff] %vm1247, %v1236
  %1254 = vst.msk [vmem:[%s4 + $0x30] sm:$0xff] %vm1247, %v1237
  %1255 = vst.msk [vmem:[%s4 + $0x38] sm:$0xff] %vm1247, %v1238
  %1256 = vst.msk [vmem:[%s4 + $0x40] sm:$0xff] %vm1247, %v1239
  %1257 = vst.msk [vmem:[%s4 + $0x48] sm:$0xff] %vm1247, %v1240
  %1258 = vst.msk [vmem:[%s4 + $0x50] sm:$0xff] %vm1247, %v1241
  %1259 = vst.msk [vmem:[%s4 + $0x58] sm:$0xff] %vm1247, %v1242
  %1260 = vst.msk [vmem:[%s4 + $0x60] sm:$0xff] %vm1247, %v1243
  %1261 = vst.msk [vmem:[%s4 + $0x68] sm:$0xff] %vm1247, %v1244
  %1262 = vst.msk [vmem:[%s4 + $0x70] sm:$0xff] %vm1247, %v1245
  %1263 = vst.msk [vmem:[%s4 + $0x78] sm:$0xff] %vm1247, %v1246
  // Predicated region
  $region18: #{cosine_uttex.1} parent=0 // pred_check
    _
  $region19: #{cosine_uttex.1} parent=0 // pred_check_branch
    %1265 = sbr.rel (0) target = $region21
  $region20: #{cosine_uttex.1} parent=0 // pred_region
    _
  $region21: #{cosine_uttex.1} parent=0 // pred_fallthru
    _
  // Predicated region
  $region22: #{cosine_uttex.1} parent=0 // pred_check
    _
  $region23: #{cosine_uttex.1} parent=0 // pred_check_branch
    %1267 = sbr.rel (0) target = $region25
  $region24: #{cosine_uttex.1} parent=0 // pred_region
    _
  $region25: #{cosine_uttex.1} parent=0 // pred_fallthru
    _

</llo_original>
